<compile_context>
chip_gen: v5e
topology: v5e:2x2
jax: 0.10.0
libtpu: 0.0.40
codegen_flags: <defaults>
</compile_context>

<pallas_src>
import jax
import jax.numpy as jnp
from jax.experimental import pallas as pl
from jax.experimental.pallas import tpu as pltpu


def _clamp(v, lo, hi):
    return jnp.minimum(jnp.maximum(v, lo), hi)


def _make_kernel(K, pad_l, L, TIN, TL, HW, WL, WR):
    """Builds the per-tile kernel.

    Static parameters:
      K      : taps
      pad_l  : left padding
      L      : true (un-padded) sequence length
      TIN    : main input tile width (== TL in the tiled path, == L in the
               single-tile fallback)
      TL     : output tile width
      HW     : halo block width (128, or L for tiny shapes)
      WL/WR  : left/right window-region widths in the VMEM scratch
    """
    base = WL - pad_l  # static offset of tap 0 inside the window scratch

    def kernel(xm_ref, xl_ref, xr_ref, w_ref, b_ref, o_ref, win_ref):
        j = pl.program_id(1)
        col0 = j * TIN                      # first x column of this main tile
        ct = o_ref.shape[0]

        # ---- assemble zero-padded window [WL | TIN | WR] in VMEM scratch ----
        lh_cols = jax.lax.broadcasted_iota(jnp.int32, (ct, HW), 1) + (col0 - HW)
        mn_cols = jax.lax.broadcasted_iota(jnp.int32, (ct, TIN), 1) + col0
        rh_cols = jax.lax.broadcasted_iota(jnp.int32, (ct, HW), 1) + (col0 + TIN)

        if WL > HW:  # only reachable in the tiny single-tile fallback
            win_ref[:, : WL - HW] = jnp.zeros((ct, WL - HW), jnp.float32)
        win_ref[:, WL - HW:WL] = jnp.where(
            (lh_cols >= 0) & (lh_cols < L),
            xl_ref[...].astype(jnp.float32), 0.0)
        win_ref[:, WL:WL + TIN] = jnp.where(
            mn_cols < L, xm_ref[...].astype(jnp.float32), 0.0)
        win_ref[:, WL + TIN:WL + TIN + HW] = jnp.where(
            rh_cols < L, xr_ref[...].astype(jnp.float32), 0.0)
        if WR > HW:  # only reachable in the tiny single-tile fallback
            win_ref[:, WL + TIN + HW:] = jnp.zeros((ct, WR - HW), jnp.float32)

        # ---- K-tap depthwise FMA via static shifted loads from the scratch ----
        acc = jnp.zeros((ct, TL), jnp.float32)
        for k in range(K):
            w_k = w_ref[:, k:k + 1].astype(jnp.float32)          # (C_t, 1)
            acc = acc + w_k * win_ref[:, base + k: base + k + TL]
        o_ref[...] = (acc + b_ref[...].astype(jnp.float32)).astype(o_ref.dtype)

    return kernel


def depthwise_conv1d(x, weight, bias, padding, *,
                     length_tile=2048, channel_tile=256):
    """Depthwise conv matching F.pad(x, padding) + nn.Conv1d(C, C, K, groups=C).

    Args:
      x:       (B, C, L)
      weight:  (C, 1, K)   torch Conv1d depthwise weight layout
      bias:    (C,)
      padding: (pad_left, pad_right) applied to the last dim
    Returns:
      (B, C, L + pad_l + pad_r - K + 1), dtype of x.
    """
    B, C, L = x.shape
    K = weight.shape[-1]
    pad_l, pad_r = padding
    Lout = L + pad_l + pad_r - K + 1
    assert Lout >= 1, "empty output"
    assert pad_l >= 0 and pad_r >= 0

    BC = B * C
    # Fold batch into the channel (sublane) axis; replicate per-channel params.
    x2 = x.reshape(BC, L)
    w2 = jnp.tile(weight.reshape(C, K), (B, 1))      # (BC, K)
    b2 = jnp.tile(bias.reshape(C, 1), (B, 1))        # (BC, 1)

    # --- channel (sublane) tiling ---
    channel_tile = max(8, (channel_tile // 8) * 8)
    C_t = BC if BC <= channel_tile else channel_tile
    grid_c = pl.cdiv(BC, C_t)

    # --- length (lane) tiling with in-kernel halo/padding ---
    length_tile = max(128, (length_tile // 128) * 128)
    if Lout >= 128 and L >= 128:
        TL = min(length_tile, (Lout // 128) * 128)   # multiple of 128
        TIN = TL
        HW = 128
        grid_l = pl.cdiv(Lout, TL)
        assert pad_l <= HW and (K - 1 - pad_l) <= HW, (
            "kernel/padding halo exceeds the 128-lane halo block")
    else:
        # Tiny-shape fallback: one tile covers everything; blocks equal the
        # full array dims so the (8,128) layout rule is satisfied.
        TL, TIN = Lout, L
        HW = 128 if L >= 128 else L
        grid_l = 1

    WL = max(pad_l, HW)                        # left window region width
    WR = max(TL + K - 1 - pad_l - TIN, HW)     # right window region width
    n_hblocks = pl.cdiv(L, HW)
    n_mblocks = pl.cdiv(L, TIN)
    tb = TIN // HW                             # main tile width in halo blocks

    def xmain_map(cj, j):
        return (cj, _clamp(j, 0, n_mblocks - 1))

    def xleft_map(cj, j):
        # 128 columns immediately left of the main tile (clamped; masked in
        # the kernel when the nominal columns fall in the zero padding).
        return (cj, _clamp(j * tb - 1, 0, n_hblocks - 1))

    def xright_map(cj, j):
        # 128 columns immediately right of the main tile (clamped; masked).
        return (cj, _clamp((j + 1) * tb, 0, n_hblocks - 1))

    kernel = _make_kernel(K, pad_l, L, TIN, TL, HW, WL, WR)

    itemsize = jnp.dtype(x.dtype).itemsize
    cost = pl.CostEstimate(
        flops=2 * K * BC * Lout,
        transcendentals=0,
        bytes_accessed=(BC * L + BC * Lout) * itemsize
        + int(w2.size + b2.size) * 4,
    )

    out2 = pl.pallas_call(
        kernel,
        out_shape=jax.ShapeDtypeStruct((BC, Lout), x.dtype),
        grid=(grid_c, grid_l),
        in_specs=[
            pl.BlockSpec((C_t, TIN), xmain_map),               # main x tile
            pl.BlockSpec((C_t, HW), xleft_map),                # left halo
            pl.BlockSpec((C_t, HW), xright_map),               # right halo
            pl.BlockSpec((C_t, K), lambda cj, j: (cj, 0)),     # taps (resident)
            pl.BlockSpec((C_t, 1), lambda cj, j: (cj, 0)),     # bias (resident)
        ],
        out_specs=pl.BlockSpec((C_t, TL), lambda cj, j: (cj, j)),
        scratch_shapes=[pltpu.VMEM((C_t, WL + TIN + WR), jnp.float32)],
        compiler_params=pltpu.CompilerParams(
            dimension_semantics=("parallel", "parallel"),
            vmem_limit_bytes=48 * 1024 * 1024,
        ),
        cost_estimate=cost,
    )(x2, x2, x2, w2, b2)

    return out2.reshape(B, C, Lout)


def _reference(x, weight, bias, padding):
    """Plain-JAX reference (same math as torch F.pad + Conv1d(groups=C))."""
    B, C, L = x.shape
    K = weight.shape[-1]
    pad_l, pad_r = padding
    xp = jnp.pad(x, ((0, 0), (0, 0), (pad_l, pad_r)))
    Lout = L + pad_l + pad_r - K + 1
    w2 = weight.reshape(C, K)
    out = jnp.zeros((B, C, Lout), jnp.float32)
    for k in range(K):
        out = out + w2[None, :, k:k + 1] * xp[:, :, k:k + Lout]
    return out + bias[None, :, None]


if __name__ == "__main__":
    key = jax.random.PRNGKey(0)
    k1, k2, k3, k4, k5, k6 = jax.random.split(key, 6)

    # Case 1: small causal depthwise conv (single-tile fallback path).
    B, C, L, K = 2, 4, 16, 3
    padding = (K - 1, 0)
    bound = 1.0 / (1 * K) ** 0.5
    x = jax.random.normal(k1, (B, C, L), dtype=jnp.float32)
    w = jax.random.uniform(k2, (C, 1, K), minval=-bound, maxval=bound,
                           dtype=jnp.float32)
    b = jax.random.uniform(k3, (C,), minval=-bound, maxval=bound,
                           dtype=jnp.float32)
    out = jax.block_until_ready(depthwise_conv1d(x, w, b, padding))
    ref = _reference(x, w, b, padding)
    assert out.shape == ref.shape, (out.shape, ref.shape)
    assert jnp.allclose(out, ref, atol=1e-4, rtol=1e-4), "case 1 mismatch"

    # Case 2: longer sequence, wide taps, "same" padding; small length_tile to
    # exercise the multi-tile halo path (both left and right halos active).
    B, C, L, K = 2, 4, 512, 31
    padding = (K // 2, K // 2)  # (15, 15): Lout == L
    bound = 1.0 / (1 * K) ** 0.5
    x = jax.random.normal(k4, (B, C, L), dtype=jnp.float32)
    w = jax.random.uniform(k5, (C, 1, K), minval=-bound, maxval=bound,
                           dtype=jnp.float32)
    b = jax.random.uniform(k6, (C,), minval=-bound, maxval=bound,
                           dtype=jnp.float32)
    out = jax.block_until_ready(
        depthwise_conv1d(x, w, b, padding, length_tile=128))
    ref = _reference(x, w, b, padding)
    assert out.shape == ref.shape, (out.shape, ref.shape)
    assert jnp.allclose(out, ref, atol=1e-4, rtol=1e-4), "case 2 mismatch"

    print("KERNEL_OK")
</pallas_src>

<mosaic_0001>
module attributes {stable_mosaic.version = 11 : i64} {
  func.func @kernel(%arg0: i32, %arg1: i32, %arg2: memref<8x16xf32, #tpu.memory_space<vmem>>, %arg3: memref<8x16xf32, #tpu.memory_space<vmem>>, %arg4: memref<8x16xf32, #tpu.memory_space<vmem>>, %arg5: memref<8x3xf32, #tpu.memory_space<vmem>>, %arg6: memref<8x1xf32, #tpu.memory_space<vmem>>, %arg7: memref<8x16xf32, #tpu.memory_space<vmem>>, %arg8: memref<8x48xf32, #tpu.memory_space<vmem>>) attributes {dimension_semantics = [#tpu.dimension_semantics<parallel>, #tpu.dimension_semantics<parallel>], iteration_bounds = array<i64: 1, 1>, scalar_prefetch = 0 : i64, scratch_operands = 1 : i64, tpu.core_type = #tpu.core_type<tc>, window_params = [{transform_indices = @transform_0, window_bounds = array<i64: 8, 16>}, {transform_indices = @transform_1, window_bounds = array<i64: 8, 16>}, {transform_indices = @transform_2, window_bounds = array<i64: 8, 16>}, {transform_indices = @transform_3, window_bounds = array<i64: 8, 3>}, {transform_indices = @transform_4, window_bounds = array<i64: 8, 1>}, {transform_indices = @transform_5, window_bounds = array<i64: 8, 16>}]} {
    %c16_i32 = arith.constant 16 : i32
    %0 = arith.muli %arg1, %c16_i32 : i32
    %1 = tpu.iota {dimensions = array<i32: 1>} : vector<8x16xi32>
    %c16_i32_0 = arith.constant 16 : i32
    %2 = arith.subi %0, %c16_i32_0 : i32
    %3 = vector.broadcast %2 : i32 to vector<8x16xi32>
    %4 = arith.addi %1, %3 : vector<8x16xi32>
    %5 = tpu.iota {dimensions = array<i32: 1>} : vector<8x16xi32>
    %6 = vector.broadcast %0 : i32 to vector<8x16xi32>
    %7 = arith.addi %5, %6 : vector<8x16xi32>
    %8 = tpu.iota {dimensions = array<i32: 1>} : vector<8x16xi32>
    %c16_i32_1 = arith.constant 16 : i32
    %9 = arith.addi %0, %c16_i32_1 : i32
    %10 = vector.broadcast %9 : i32 to vector<8x16xi32>
    %11 = arith.addi %8, %10 : vector<8x16xi32>
    %c0_i32 = arith.constant 0 : i32
    %12 = vector.broadcast %c0_i32 : i32 to vector<8x16xi32>
    %13 = arith.cmpi sge, %4, %12 : vector<8x16xi32>
    %c16_i32_2 = arith.constant 16 : i32
    %14 = vector.broadcast %c16_i32_2 : i32 to vector<8x16xi32>
    %15 = arith.cmpi slt, %4, %14 : vector<8x16xi32>
    %16 = arith.andi %13, %15 : vector<8x16xi1>
    %c0 = arith.constant 0 : index
    %c0_3 = arith.constant 0 : index
    %17 = vector.load %arg3[%c0, %c0_3] : memref<8x16xf32, #tpu.memory_space<vmem>>, vector<8x16xf32>
    %cst = arith.constant 0.000000e+00 : f32
    %18 = vector.broadcast %cst : f32 to vector<8x16xf32>
    %19 = arith.select %16, %17, %18 : vector<8x16xi1>, vector<8x16xf32>
    %c0_4 = arith.constant 0 : index
    %c0_5 = arith.constant 0 : index
    %20 = vector.load %arg8[%c0_4, %c0_5] : memref<8x48xf32, #tpu.memory_space<vmem>>, vector<8x16xf32>
    tpu.vector_store %arg8[%c0_4, %c0_5], %19 {strides = array<i32>} : memref<8x48xf32, #tpu.memory_space<vmem>>, vector<8x16xf32>,
    %c16_i32_6 = arith.constant 16 : i32
    %21 = vector.broadcast %c16_i32_6 : i32 to vector<8x16xi32>
    %22 = arith.cmpi slt, %7, %21 : vector<8x16xi32>
    %c0_7 = arith.constant 0 : index
    %c0_8 = arith.constant 0 : index
    %23 = vector.load %arg2[%c0_7, %c0_8] : memref<8x16xf32, #tpu.memory_space<vmem>>, vector<8x16xf32>
    %cst_9 = arith.constant 0.000000e+00 : f32
    %24 = vector.broadcast %cst_9 : f32 to vector<8x16xf32>
    %25 = arith.select %22, %23, %24 : vector<8x16xi1>, vector<8x16xf32>
    %c0_10 = arith.constant 0 : index
    %c16 = arith.constant 16 : index
    %26 = vector.load %arg8[%c0_10, %c16] : memref<8x48xf32, #tpu.memory_space<vmem>>, vector<8x16xf32>
    tpu.vector_store %arg8[%c0_10, %c16], %25 {strides = array<i32>} : memref<8x48xf32, #tpu.memory_space<vmem>>, vector<8x16xf32>,
    %c16_i32_11 = arith.constant 16 : i32
    %27 = vector.broadcast %c16_i32_11 : i32 to vector<8x16xi32>
    %28 = arith.cmpi slt, %11, %27 : vector<8x16xi32>
    %c0_12 = arith.constant 0 : index
    %c0_13 = arith.constant 0 : index
    %29 = vector.load %arg4[%c0_12, %c0_13] : memref<8x16xf32, #tpu.memory_space<vmem>>, vector<8x16xf32>
    %cst_14 = arith.constant 0.000000e+00 : f32
    %30 = vector.broadcast %cst_14 : f32 to vector<8x16xf32>
    %31 = arith.select %28, %29, %30 : vector<8x16xi1>, vector<8x16xf32>
    %c0_15 = arith.constant 0 : index
    %c32 = arith.constant 32 : index
    %32 = vector.load %arg8[%c0_15, %c32] : memref<8x48xf32, #tpu.memory_space<vmem>>, vector<8x16xf32>
    tpu.vector_store %arg8[%c0_15, %c32], %31 {strides = array<i32>} : memref<8x48xf32, #tpu.memory_space<vmem>>, vector<8x16xf32>,
    %cst_16 = arith.constant 0.000000e+00 : f32
    %33 = vector.broadcast %cst_16 : f32 to vector<8x16xf32>
    %c0_17 = arith.constant 0 : index
    %c0_18 = arith.constant 0 : index
    %34 = vector.load %arg5[%c0_17, %c0_18] : memref<8x3xf32, #tpu.memory_space<vmem>>, vector<8x1xf32>
    %c0_19 = arith.constant 0 : index
    %c14 = arith.constant 14 : index
    %35 = vector.load %arg8[%c0_19, %c14] : memref<8x48xf32, #tpu.memory_space<vmem>>, vector<8x16xf32>
    %36 = vector.broadcast %34 : vector<8x1xf32> to vector<8x16xf32>
    %37 = arith.mulf %36, %35 : vector<8x16xf32>
    %38 = arith.addf %33, %37 : vector<8x16xf32>
    %c0_20 = arith.constant 0 : index
    %c1 = arith.constant 1 : index
    %39 = vector.load %arg5[%c0_20, %c1] : memref<8x3xf32, #tpu.memory_space<vmem>>, vector<8x1xf32>
    %c0_21 = arith.constant 0 : index
    %c15 = arith.constant 15 : index
    %40 = vector.load %arg8[%c0_21, %c15] : memref<8x48xf32, #tpu.memory_space<vmem>>, vector<8x16xf32>
    %41 = vector.broadcast %39 : vector<8x1xf32> to vector<8x16xf32>
    %42 = arith.mulf %41, %40 : vector<8x16xf32>
    %43 = arith.addf %38, %42 : vector<8x16xf32>
    %c0_22 = arith.constant 0 : index
    %c2 = arith.constant 2 : index
    %44 = vector.load %arg5[%c0_22, %c2] : memref<8x3xf32, #tpu.memory_space<vmem>>, vector<8x1xf32>
    %c0_23 = arith.constant 0 : index
    %c16_24 = arith.constant 16 : index
    %45 = vector.load %arg8[%c0_23, %c16_24] : memref<8x48xf32, #tpu.memory_space<vmem>>, vector<8x16xf32>
    %46 = vector.broadcast %44 : vector<8x1xf32> to vector<8x16xf32>
    %47 = arith.mulf %46, %45 : vector<8x16xf32>
    %48 = arith.addf %43, %47 : vector<8x16xf32>
    %c0_25 = arith.constant 0 : index
    %c0_26 = arith.constant 0 : index
    %49 = vector.load %arg6[%c0_25, %c0_26] : memref<8x1xf32, #tpu.memory_space<vmem>>, vector<8x1xf32>
    %50 = vector.broadcast %49 : vector<8x1xf32> to vector<8x16xf32>
    %51 = arith.addf %48, %50 : vector<8x16xf32>
    %c0_27 = arith.constant 0 : index
    %c0_28 = arith.constant 0 : index
    %52 = vector.load %arg7[%c0_27, %c0_28] : memref<8x16xf32, #tpu.memory_space<vmem>>, vector<8x16xf32>
    tpu.vector_store %arg7[%c0_27, %c0_28], %51 {strides = array<i32>} : memref<8x16xf32, #tpu.memory_space<vmem>>, vector<8x16xf32>,
    return
  }
  func.func @transform_0(%arg0: i32, %arg1: i32) -> (i32, i32) {
    %c0_i32 = arith.constant 0 : i32
    %0 = arith.maxsi %arg1, %c0_i32 : i32
    %c0_i32_0 = arith.constant 0 : i32
    %1 = arith.minsi %0, %c0_i32_0 : i32
    %c0_i32_1 = arith.constant 0 : i32
    return %arg0, %1 : i32, i32
  }
  func.func @transform_1(%arg0: i32, %arg1: i32) -> (i32, i32) {
    %c1_i32 = arith.constant 1 : i32
    %0 = arith.muli %arg1, %c1_i32 : i32
    %c1_i32_0 = arith.constant 1 : i32
    %1 = arith.subi %0, %c1_i32_0 : i32
    %c0_i32 = arith.constant 0 : i32
    %2 = arith.maxsi %1, %c0_i32 : i32
    %c0_i32_1 = arith.constant 0 : i32
    %3 = arith.minsi %2, %c0_i32_1 : i32
    %c0_i32_2 = arith.constant 0 : i32
    return %arg0, %3 : i32, i32
  }
  func.func @transform_2(%arg0: i32, %arg1: i32) -> (i32, i32) {
    %c1_i32 = arith.constant 1 : i32
    %0 = arith.addi %arg1, %c1_i32 : i32
    %c1_i32_0 = arith.constant 1 : i32
    %1 = arith.muli %0, %c1_i32_0 : i32
    %c0_i32 = arith.constant 0 : i32
    %2 = arith.maxsi %1, %c0_i32 : i32
    %c0_i32_1 = arith.constant 0 : i32
    %3 = arith.minsi %2, %c0_i32_1 : i32
    %c0_i32_2 = arith.constant 0 : i32
    return %arg0, %3 : i32, i32
  }
  func.func @transform_3(%arg0: i32, %arg1: i32) -> (i32, i32) {
    %c0_i32 = arith.constant 0 : i32
    %c0_i32_0 = arith.constant 0 : i32
    return %arg0, %c0_i32 : i32, i32
  }
  func.func @transform_4(%arg0: i32, %arg1: i32) -> (i32, i32) {
    %c0_i32 = arith.constant 0 : i32
    %c0_i32_0 = arith.constant 0 : i32
    return %arg0, %c0_i32 : i32, i32
  }
  func.func @transform_5(%arg0: i32, %arg1: i32) -> (i32, i32) {
    %c0_i32 = arith.constant 0 : i32
    return %arg0, %arg1 : i32, i32
  }
}

</mosaic_0001>

<llo_original>
// kernel: tpu_custom_call.1
$region0: #{tpu_custom_call.1}
  #allocation0 [shape = 'u32[]', space=smem, size = 0x4, offset = 0x4, fixed_abs, tag = 'smem constant byte address 0x4 - core index']
  #allocation1 [shape = 'u32[72,128]{1,0:T(1,128)}', space=vmem, size = 0x9000, scoped, tag = 'internal scratch']
  #allocation2 [shape = 'f32[8,48]{1,0:T(8,128)}', space=vmem, size = 0x1000, scoped, tag = 'scratch operand']
  %s0 = inlined_call_operand.vmem [shape: f32[8,16], index: 0, kind: input, shape index: {}]
  %s1 = inlined_call_operand.vmem [shape: f32[8,16], index: 1, kind: input, shape index: {}]
  %s2 = inlined_call_operand.hbm [shape: f32[8,16], index: 2, kind: input, shape index: {}]
  %s3 = inlined_call_operand.vmem [shape: f32[8,3], index: 3, kind: input, shape index: {}]
  %s4 = inlined_call_operand.vmem [shape: f32[8,1], index: 4, kind: input, shape index: {}]
  %s5 = inlined_call_operand.hbm [shape: f32[8,16], index: 5, kind: output, shape index: {}]
  %s6 = sld [smem:[#allocation0]]
  $region34: #{tpu_custom_call.1} parent=0
    _
  %s8 = ssub.s32 1, %s6
  %s9 = scalar_select 0, %s8, %s6
  $region1: #{tpu_custom_call.1} parent=0
    #allocation3 [shape = 'u8[4096]{0}', space=vmem, size = 0x1000, scoped, tag = 'input window, operand 2, single buffered']
    #allocation4 [shape = 's32[1]{0}', space=sflag, size = 0x4, scoped, tag = 'scoped memory for tpu_custom_call.1']
    #allocation5 [shape = 's32[1]{0}', space=sflag, size = 0x4, scoped, tag = 'scoped memory for tpu_custom_call.1']
    #allocation6 [shape = 'u8[4096]{0}', space=vmem, size = 0x1000, scoped, tag = 'output window, operand 0, single buffered']
    %10 = vsyncpa [#allocation4], 0
    %11 = vsyncpa [#allocation5], 0
    // Predicated region
    $region2: #{tpu_custom_call.1} parent=1 // pred_check
      _
    $region3: #{tpu_custom_call.1} parent=1 // pred_check_branch
      %13 = sbr.rel (0) target = $region5
    $region4: #{tpu_custom_call.1} parent=1 // pred_region
      _
    $region5: #{tpu_custom_call.1} parent=1 // pred_fallthru
      _
    // Predicated region
    $region6: #{tpu_custom_call.1} parent=1 // pred_check
      _
    $region7: #{tpu_custom_call.1} parent=1 // pred_check_branch
      %15 = sbr.rel (0) target = $region9
    $region8: #{tpu_custom_call.1} parent=1 // pred_region
      %s16 = ssub.s32 0, 1
      %p17 = scmp.gt.s32.totalorder %s16, 0
      %s18 = scalar_select %p17, %s16, 0
      %p19 = scmp.lt.s32.totalorder %s18, 0
      %s20 = scalar_select %p19, %s18, 0
      %p21 = scmp.lt.s32.totalorder %s20, 0
      %s22 = scalar_select %p21, %s20, 0
      %s23 = smul.addr %s22, 8
      %s24 = scalar_lea.vmem %s1, %s23
      %s25 = ssub.s32 0, 1
      %p26 = scmp.gt.s32.totalorder %s25, 0
      %s27 = scalar_select %p26, %s25, 0
      %p28 = scmp.lt.s32.totalorder %s27, 0
      %s29 = scalar_select %p28, %s27, 0
    $region9: #{tpu_custom_call.1} parent=1 // pred_fallthru
      _
    // Predicated region
    $region10: #{tpu_custom_call.1} parent=1 // pred_check
      _
    $region11: #{tpu_custom_call.1} parent=1 // pred_check_branch
      %31 = sbr.rel (0) target = $region13
    $region12: #{tpu_custom_call.1} parent=1 // pred_region
      %s32 = sadd.s32 0, 1
      %p33 = scmp.gt.s32.totalorder %s32, 0
      %s34 = scalar_select %p33, %s32, 0
      %p35 = scmp.lt.s32.totalorder %s34, 0
      %s36 = scalar_select %p35, %s34, 0
      %38 = vsyncadd [#allocation4], 0
      %s39 = smul.addr %s36, 8
      %s40 = scalar_lea.hbm %s2, %s39
      %s42 = sshll.u32 %s40, 4
      %s43 = int_to_ptr.hbm [resolvable:$true] %s42
      %s44 = sshll.u32 [#allocation3], 4
      %s45 = int_to_ptr.vmem [resolvable:$true] %s44
      %47 = dma.hbm_to_vmem [thread:$0]  %s43, 128, %s45, [#allocation4]
    $region13: #{tpu_custom_call.1} parent=1 // pred_fallthru
      _
    // Predicated region
    $region14: #{tpu_custom_call.1} parent=1 // pred_check
      _
    $region15: #{tpu_custom_call.1} parent=1 // pred_check_branch
      %49 = sbr.rel (0) target = $region17
    $region16: #{tpu_custom_call.1} parent=1 // pred_region
      _
    $region17: #{tpu_custom_call.1} parent=1 // pred_fallthru
      _
    // Predicated region
    $region18: #{tpu_custom_call.1} parent=1 // pred_check
      _
    $region19: #{tpu_custom_call.1} parent=1 // pred_check_branch
      %51 = sbr.rel (0) target = $region21
    $region20: #{tpu_custom_call.1} parent=1 // pred_region
      _
    $region21: #{tpu_custom_call.1} parent=1 // pred_fallthru
      _
    // Predicated region
    $region22: #{tpu_custom_call.1} parent=1 // pred_check
      _
    $region23: #{tpu_custom_call.1} parent=1 // pred_check_branch
      %53 = sbr.rel (0) target = $region25
    $region24: #{tpu_custom_call.1} parent=1 // pred_region
      %55 = dma.done [#allocation4], 128
    $region25: #{tpu_custom_call.1} parent=1 // pred_fallthru
      _
    %s56 = ssub.s32 0, 1
    %p57 = scmp.gt.s32.totalorder %s56, 0
    %s58 = scalar_select %p57, %s56, 0
    %p59 = scmp.lt.s32.totalorder %s58, 0
    %s60 = scalar_select %p59, %s58, 0
    %p61 = scmp.lt.s32.totalorder %s60, 0
    %s62 = scalar_select %p61, %s60, 0
    %s63 = smul.addr %s62, 8
    %s64 = scalar_lea.vmem %s1, %s63
    %s65 = ssub.s32 0, 1
    %p66 = scmp.gt.s32.totalorder %s65, 0
    %s67 = scalar_select %p66, %s65, 0
    %p68 = scmp.lt.s32.totalorder %s67, 0
    %s69 = scalar_select %p68, %s67, 0
    %p70 = scmp.lt.s32.totalorder %s69, 0
    %s71 = scalar_select %p70, %s69, 0
    %s72 = smul.addr %s71, 8
    %s73 = scalar_lea.vmem %s1, %s72
    %s74 = ssub.s32 0, 1
    %p75 = scmp.gt.s32.totalorder %s74, 0
    %s76 = scalar_select %p75, %s74, 0
    %p77 = scmp.lt.s32.totalorder %s76, 0
    %s78 = scalar_select %p77, %s76, 0
    %s79 = sadd.s32 0, 1
    %p80 = scmp.gt.s32.totalorder %s79, 0
    %s81 = scalar_select %p80, %s79, 0
    %p82 = scmp.lt.s32.totalorder %s81, 0
    %s83 = scalar_select %p82, %s81, 0
    %s84 = smul.u32 0, 16
    %v85 = vlaneseq
    %v86 = vand.u32 %v85, 127
    %s87 = ssub.s32 %s84, 16
    %v88 = vstv %s87
    %v89 = vadd.s32 %v86, %v88
    %v90 = vstv %s84
    %v91 = vadd.s32 %v86, %v90
    %s92 = sadd.s32 %s84, 16
    %v93 = vstv %s92
    %v94 = vadd.s32 %v86, %v93
    %vm95 = vcmp.ge.s32.totalorder %v89, 0
    %vm96 = vcmp.lt.s32.totalorder %v89, 16
    %vm97 = vmand %vm95, %vm96
    %v98 = vld [vmem:[%s73] sm:$0xff]
    %v99 = vsel %vm97, %v98, 0.0
    %vm100 = vcmask 130048
    %101 = vst.msk [vmem:[#allocation2] sm:$0xff] %vm100, %v99
    %vm102 = vcmp.lt.s32.totalorder %v91, 16
    %v103 = vld [vmem:[%s0] sm:$0xff]
    %v104 = vsel %vm102, %v103, 0.0
    %106 = vrot.lane.b32.xlu0 %v104, 16
    %v107 = vpop.permute.xlu0 %106
    %vm109 = vcmask 261248
    %110 = vst.msk [vmem:[#allocation2] sm:$0xff] %vm109, %v107
    %vm111 = vcmp.lt.s32.totalorder %v94, 16
    %v112 = vld [vmem:[#allocation3] sm:$0xff]
    %v113 = vsel %vm111, %v112, 0.0
    %115 = vrot.lane.b32.xlu0 %v113, 32
    %v116 = vpop.permute.xlu0 %115
    %vm118 = vcmask 392448
    %119 = vst.msk [vmem:[#allocation2] sm:$0xff] %vm118, %v116
    %v120 = vld [vmem:[%s3] sm:$0xff]
    %v121 = vld [vmem:[#allocation2] sm:$0xff]
    %123 = vset.pattern.permute.xlu0 0
    %124 = vperm.xlu0 %123, %v120
    %v125 = vpop.permute.xlu0 %124
    %v127 = vmul.f32 %v125, %v121
    %v128 = vadd.f32 %v127, 0.0
    %129 = vset.pattern.permute.xlu0 1
    %130 = vperm.xlu0 %129, %v120
    %v131 = vpop.permute.xlu0 %130
    %v133 = vmul.f32 %v131, %v121
    %135 = vrot.lane.b32.xlu0 %v133, 127
    %v136 = vpop.permute.xlu0 %135
    %v138 = vadd.f32 %v128, %v136
    %139 = vset.pattern.permute.xlu0 2
    %140 = vperm.xlu0 %139, %v120
    %v141 = vpop.permute.xlu0 %140
    %v143 = vmul.f32 %v141, %v121
    %145 = vrot.lane.b32.xlu0 %v143, 126
    %v146 = vpop.permute.xlu0 %145
    %v148 = vadd.f32 %v138, %v146
    %v149 = vld [vmem:[%s4] sm:$0xff]
    %151 = vset.pattern.permute.xlu0 0
    %152 = vperm.xlu0 %151, %v149
    %v153 = vpop.permute.xlu0 %152
    %v155 = vadd.f32 %v148, %v153
    %157 = vrot.lane.b32.xlu0 %v155, 114
    %v158 = vpop.permute.xlu0 %157
    %160 = vst.msk [vmem:[#allocation6] sm:$0xff] %vm100, %v158
    // Predicated region
    $region26: #{tpu_custom_call.1} parent=1 // pred_check
      _
    $region27: #{tpu_custom_call.1} parent=1 // pred_check_branch
      %162 = sbr.rel (0) target = $region29
    $region28: #{tpu_custom_call.1} parent=1 // pred_region
      %164 = vsyncadd [#allocation5], 0
      %s166 = sshll.u32 [#allocation6], 4
      %s167 = int_to_ptr.vmem [resolvable:$true] %s166
      %s168 = sshll.u32 %s5, 4
      %s169 = int_to_ptr.hbm [resolvable:$true] %s168
      %171 = dma.vmem_to_hbm [thread:$0]  %s167, 128, %s169, [#allocation5]
    $region29: #{tpu_custom_call.1} parent=1 // pred_fallthru
      _
    // Predicated region
    $region30: #{tpu_custom_call.1} parent=1 // pred_check
      _
    $region31: #{tpu_custom_call.1} parent=1 // pred_check_branch
      %173 = sbr.rel (0) target = $region33
    $region32: #{tpu_custom_call.1} parent=1 // pred_region
      %175 = dma.done [#allocation5], 128
    $region33: #{tpu_custom_call.1} parent=1 // pred_fallthru
      _
    %176 = vsyncpa [#allocation4], 1
    %177 = vsyncpa [#allocation5], 1

</llo_original>
